<compile_context>
chip_gen: v6e
topology: v6e:2x2x1
jax: 0.10.0
libtpu: 0.0.40
codegen_flags: <defaults>
</compile_context>

<pallas_src>
import jax
import jax.numpy as jnp
from jax.experimental import pallas as pl
from jax.experimental.pallas import tpu as pltpu


def _make_kernel(S, L, K):
    """Build the kernel for seq-len S, interleaved lane width L = 2*C, taps K."""
    T = S - K + 1  # out_seq_len

    def kernel(x_ref, wa_ref, wc_ref, o_ref):
        xv = x_ref[...]                       # (bb, S, L), lanes = [r0,i0,r1,i1,...]
        wa = wa_ref[...]                      # (K, L): w_r duplicated per (re,im) pair
        wc = wc_ref[...]                      # (K, L): (-w_i, +w_i) interleaved

        # Pair-swap even/odd lanes of the input ONCE (re <-> im per channel), so the
        # tap loop below is a pure elementwise MAC with no post-processing:
        #   xv_sw[..., 2c]   = x_i(c)      xv_sw[..., 2c+1] = x_r(c)
        # Even destination lanes take the next lane, odd lanes take the previous lane.
        z_next = jnp.concatenate([xv[:, :, 1:], xv[:, :, :1]], axis=-1)    # xv[j+1]
        z_prev = jnp.concatenate([xv[:, :, -1:], xv[:, :, :-1]], axis=-1)  # xv[j-1]
        lane = jax.lax.broadcasted_iota(jnp.int32, xv.shape, 2)
        xv_sw = jnp.where(lane % 2 == 0, z_next, z_prev)

        bb = xv.shape[0]
        acc = jnp.zeros((bb, T, L), jnp.float32)
        for k in range(K):                    # K small & static -> unrolled
            win = xv[:, k:k + T, :]           # (bb, T, L) static value slice
            win_sw = xv_sw[:, k:k + T, :]
            # lane 2c   : x_r*w_r + x_i*(-w_i) = Re(w * x)
            # lane 2c+1 : x_i*w_r + x_r*(+w_i) = Im(w * x)
            acc = acc + win * wa[k:k + 1, :] + win_sw * wc[k:k + 1, :]

        o_ref[...] = acc.astype(o_ref.dtype)

    return kernel, T


def _pick_batch_tile(B, S, T, L, budget_bytes=8 << 20):
    """Largest batch tile that divides B and keeps the double-buffered in+out
    blocks comfortably inside the default scoped-VMEM budget."""
    per_row = (S * L + T * L) * 4 * 2  # f32, input + output block, double-buffered
    bb = max(1, min(B, budget_bytes // max(per_row, 1)))
    while B % bb:
        bb -= 1
    return bb


@jax.jit
def txa_filter_complex(x, w_real, w_imag):
    """x: (B, S, C, 2) f32; w_real/w_imag: (K, C) f32 -> (B, S-K+1, C, 1, 2) f32."""
    B, S, C, two = x.shape
    assert two == 2
    K, Cw = w_real.shape
    assert Cw == C
    L = 2 * C
    T = S - K + 1

    # Free, contiguous reshape: lanes become [re(c0), im(c0), re(c1), im(c1), ...].
    x2 = x.reshape(B, S, L)

    # Pre-interleave the (tiny, K*2C) weights once.  Signs are folded in so the
    # kernel's tap loop needs no complex bookkeeping:
    #   wa[k, 2c] = wa[k, 2c+1] = w_r[k, c]
    #   wc[k, 2c] = -w_i[k, c]   (multiplies swapped x_i  -> real lane)
    #   wc[k, 2c+1] = +w_i[k, c] (multiplies swapped x_r  -> imag lane)
    wa = jnp.repeat(w_real, 2, axis=1)                            # (K, L)
    wc = jnp.stack((-w_imag, w_imag), axis=-1).reshape(K, L)      # (K, L)

    bb = _pick_batch_tile(B, S, T, L)
    kernel, _ = _make_kernel(S, L, K)

    out2 = pl.pallas_call(
        kernel,
        out_shape=jax.ShapeDtypeStruct((B, T, L), jnp.float32),
        grid=(B // bb,),
        in_specs=[
            pl.BlockSpec((bb, S, L), lambda g: (g, 0, 0)),
            pl.BlockSpec((K, L), lambda g: (0, 0)),
            pl.BlockSpec((K, L), lambda g: (0, 0)),
        ],
        out_specs=pl.BlockSpec((bb, T, L), lambda g: (g, 0, 0)),
        compiler_params=pltpu.CompilerParams(
            dimension_semantics=("parallel",)),
    )(x2, wa, wc)

    # Metadata-only reshapes back to the PyTorch output layout (B, T, C, 1, 2).
    return out2.reshape(B, T, C, 2)[:, :, :, None, :]


def _reference(x, w_real, w_imag):
    """Plain-JAX complex reference (mirrors the PyTorch per-channel complex Conv1d)."""
    B, S, C, _ = x.shape
    K = w_real.shape[0]
    T = S - K + 1
    xc = x[..., 0] + 1j * x[..., 1]                 # (B, S, C) complex64
    wc = w_real + 1j * w_imag                       # (K, C)    complex64
    cols = []
    for t in range(T):
        # y[b, t, c] = sum_k w[k, c] * x[b, t+k, c]   (cross-correlation)
        cols.append(jnp.sum(xc[:, t:t + K, :] * wc[None, :, :], axis=1))
    yc = jnp.stack(cols, axis=1)                    # (B, T, C)
    out = jnp.stack((yc.real, yc.imag), axis=-1)    # (B, T, C, 2)
    return out[:, :, :, None, :]                    # (B, T, C, 1, 2)


if __name__ == "__main__":
    # Module config: n_channels=4, in_seq_size=16, out_seq_size=8 -> conv_size=9
    n_channels = 4
    in_seq_size = 16
    out_seq_size = 8
    conv_size = in_seq_size - out_seq_size + 1
    batch = 2

    key = jax.random.PRNGKey(0)
    kx, kwr, kwi = jax.random.split(key, 3)

    # Input: (B, S, C, 2) real float32 (last dim = real/imag parts)
    x = jax.random.normal(kx, (batch, in_seq_size, n_channels, 2), dtype=jnp.float32)

    # Deterministic synthetic complex conv weights, one size-K filter per channel,
    # stacked as (K, C) real/imag planes (matches PyTorch's per-channel complex64 conv).
    w_real = jax.random.normal(kwr, (conv_size, n_channels), dtype=jnp.float32) * 0.1
    w_imag = jax.random.normal(kwi, (conv_size, n_channels), dtype=jnp.float32) * 0.1

    out = txa_filter_complex(x, w_real, w_imag)
    out = jax.block_until_ready(out)

    ref = _reference(x, w_real, w_imag)
    assert out.shape == (batch, out_seq_size, n_channels, 1, 2), out.shape
    assert jnp.allclose(out, ref, atol=1e-5, rtol=1e-5), "mismatch vs reference"

    print("KERNEL_OK")
</pallas_src>

<mosaic_0001>
module attributes {stable_mosaic.version = 11 : i64} {
  func.func @kernel(%arg0: i32, %arg1: memref<2x16x8xf32, #tpu.memory_space<vmem>>, %arg2: memref<9x8xf32, #tpu.memory_space<vmem>>, %arg3: memref<9x8xf32, #tpu.memory_space<vmem>>, %arg4: memref<2x8x8xf32, #tpu.memory_space<vmem>>) attributes {dimension_semantics = [#tpu.dimension_semantics<parallel>], iteration_bounds = array<i64: 1>, scalar_prefetch = 0 : i64, scratch_operands = 0 : i64, tpu.core_type = #tpu.core_type<tc>, window_params = [{transform_indices = @transform_0, window_bounds = array<i64: 2, 16, 8>}, {pipeline_mode = #tpu.pipeline_mode<synchronous>, transform_indices = @transform_1, window_bounds = array<i64: 9, 8>}, {pipeline_mode = #tpu.pipeline_mode<synchronous>, transform_indices = @transform_2, window_bounds = array<i64: 9, 8>}, {transform_indices = @transform_3, window_bounds = array<i64: 2, 8, 8>}]} {
    %c0 = arith.constant 0 : index
    %c0_0 = arith.constant 0 : index
    %c0_1 = arith.constant 0 : index
    %0 = vector.load %arg1[%c0, %c0_0, %c0_1] : memref<2x16x8xf32, #tpu.memory_space<vmem>>, vector<2x16x8xf32>
    %c0_2 = arith.constant 0 : index
    %c0_3 = arith.constant 0 : index
    %1 = vector.load %arg2[%c0_2, %c0_3] : memref<9x8xf32, #tpu.memory_space<vmem>>, vector<9x8xf32>
    %c0_4 = arith.constant 0 : index
    %c0_5 = arith.constant 0 : index
    %2 = vector.load %arg3[%c0_4, %c0_5] : memref<9x8xf32, #tpu.memory_space<vmem>>, vector<9x8xf32>
    %3 = vector.extract_strided_slice %0 {offsets = [0, 0, 1], sizes = [2, 16, 7], strides = [1, 1, 1]} : vector<2x16x8xf32> to vector<2x16x7xf32>
    %4 = vector.extract_strided_slice %0 {offsets = [0, 0, 0], sizes = [2, 16, 1], strides = [1, 1, 1]} : vector<2x16x8xf32> to vector<2x16x1xf32>
    %5 = tpu.concatenate %3, %4 in 2 : vector<2x16x7xf32>, vector<2x16x1xf32> -> vector<2x16x8xf32>
    %6 = vector.extract_strided_slice %0 {offsets = [0, 0, 7], sizes = [2, 16, 1], strides = [1, 1, 1]} : vector<2x16x8xf32> to vector<2x16x1xf32>
    %7 = vector.extract_strided_slice %0 {offsets = [0, 0, 0], sizes = [2, 16, 7], strides = [1, 1, 1]} : vector<2x16x8xf32> to vector<2x16x7xf32>
    %8 = tpu.concatenate %6, %7 in 2 : vector<2x16x1xf32>, vector<2x16x7xf32> -> vector<2x16x8xf32>
    %9 = tpu.iota {dimensions = array<i32: 2>} : vector<2x16x8xi32>
    %c2_i32 = arith.constant 2 : i32
    %c0_i32 = arith.constant 0 : i32
    %10 = arith.cmpi eq, %c2_i32, %c0_i32 : i32
    %c1_i32 = arith.constant 1 : i32
    %11 = arith.select %10, %c1_i32, %c2_i32 : i32
    %12 = vector.broadcast %11 : i32 to vector<2x16x8xi32>
    %13 = arith.remsi %9, %12 : vector<2x16x8xi32>
    %c0_i32_6 = arith.constant 0 : i32
    %14 = vector.broadcast %c0_i32_6 : i32 to vector<2x16x8xi32>
    %15 = arith.cmpi ne, %13, %14 : vector<2x16x8xi32>
    %c0_i32_7 = arith.constant 0 : i32
    %16 = vector.broadcast %c0_i32_7 : i32 to vector<2x16x8xi32>
    %17 = arith.cmpi slt, %13, %16 : vector<2x16x8xi32>
    %c0_i32_8 = arith.constant 0 : i32
    %18 = arith.cmpi slt, %11, %c0_i32_8 : i32
    %19 = vector.broadcast %18 : i1 to vector<2x16x8xi1>
    %20 = vector.broadcast %19 : vector<2x16x8xi1> to vector<2x16x8xi1>
    %21 = arith.xori %17, %20 : vector<2x16x8xi1>
    %22 = arith.andi %21, %15 : vector<2x16x8xi1>
    %23 = vector.broadcast %11 : i32 to vector<2x16x8xi32>
    %24 = arith.addi %13, %23 : vector<2x16x8xi32>
    %25 = arith.select %22, %24, %13 : vector<2x16x8xi1>, vector<2x16x8xi32>
    %c0_i32_9 = arith.constant 0 : i32
    %26 = vector.broadcast %c0_i32_9 : i32 to vector<2x16x8xi32>
    %27 = arith.cmpi eq, %25, %26 : vector<2x16x8xi32>
    %28 = arith.select %27, %5, %8 : vector<2x16x8xi1>, vector<2x16x8xf32>
    %cst = arith.constant 0.000000e+00 : f32
    %29 = vector.broadcast %cst : f32 to vector<2x8x8xf32>
    %30 = vector.extract_strided_slice %0 {offsets = [0, 0, 0], sizes = [2, 8, 8], strides = [1, 1, 1]} : vector<2x16x8xf32> to vector<2x8x8xf32>
    %31 = vector.extract_strided_slice %28 {offsets = [0, 0, 0], sizes = [2, 8, 8], strides = [1, 1, 1]} : vector<2x16x8xf32> to vector<2x8x8xf32>
    %32 = vector.extract_strided_slice %1 {offsets = [0, 0], sizes = [1, 8], strides = [1, 1]} : vector<9x8xf32> to vector<1x8xf32>
    %33 = vector.shape_cast %32 : vector<1x8xf32> to vector<1x1x8xf32>
    %34 = vector.broadcast %33 : vector<1x1x8xf32> to vector<2x8x8xf32>
    %35 = arith.mulf %30, %34 : vector<2x8x8xf32>
    %36 = arith.addf %29, %35 : vector<2x8x8xf32>
    %37 = vector.extract_strided_slice %2 {offsets = [0, 0], sizes = [1, 8], strides = [1, 1]} : vector<9x8xf32> to vector<1x8xf32>
    %38 = vector.shape_cast %37 : vector<1x8xf32> to vector<1x1x8xf32>
    %39 = vector.broadcast %38 : vector<1x1x8xf32> to vector<2x8x8xf32>
    %40 = arith.mulf %31, %39 : vector<2x8x8xf32>
    %41 = arith.addf %36, %40 : vector<2x8x8xf32>
    %42 = vector.extract_strided_slice %0 {offsets = [0, 1, 0], sizes = [2, 8, 8], strides = [1, 1, 1]} : vector<2x16x8xf32> to vector<2x8x8xf32>
    %43 = vector.extract_strided_slice %28 {offsets = [0, 1, 0], sizes = [2, 8, 8], strides = [1, 1, 1]} : vector<2x16x8xf32> to vector<2x8x8xf32>
    %44 = vector.extract_strided_slice %1 {offsets = [1, 0], sizes = [1, 8], strides = [1, 1]} : vector<9x8xf32> to vector<1x8xf32>
    %45 = vector.shape_cast %44 : vector<1x8xf32> to vector<1x1x8xf32>
    %46 = vector.broadcast %45 : vector<1x1x8xf32> to vector<2x8x8xf32>
    %47 = arith.mulf %42, %46 : vector<2x8x8xf32>
    %48 = arith.addf %41, %47 : vector<2x8x8xf32>
    %49 = vector.extract_strided_slice %2 {offsets = [1, 0], sizes = [1, 8], strides = [1, 1]} : vector<9x8xf32> to vector<1x8xf32>
    %50 = vector.shape_cast %49 : vector<1x8xf32> to vector<1x1x8xf32>
    %51 = vector.broadcast %50 : vector<1x1x8xf32> to vector<2x8x8xf32>
    %52 = arith.mulf %43, %51 : vector<2x8x8xf32>
    %53 = arith.addf %48, %52 : vector<2x8x8xf32>
    %54 = vector.extract_strided_slice %0 {offsets = [0, 2, 0], sizes = [2, 8, 8], strides = [1, 1, 1]} : vector<2x16x8xf32> to vector<2x8x8xf32>
    %55 = vector.extract_strided_slice %28 {offsets = [0, 2, 0], sizes = [2, 8, 8], strides = [1, 1, 1]} : vector<2x16x8xf32> to vector<2x8x8xf32>
    %56 = vector.extract_strided_slice %1 {offsets = [2, 0], sizes = [1, 8], strides = [1, 1]} : vector<9x8xf32> to vector<1x8xf32>
    %57 = vector.shape_cast %56 : vector<1x8xf32> to vector<1x1x8xf32>
    %58 = vector.broadcast %57 : vector<1x1x8xf32> to vector<2x8x8xf32>
    %59 = arith.mulf %54, %58 : vector<2x8x8xf32>
    %60 = arith.addf %53, %59 : vector<2x8x8xf32>
    %61 = vector.extract_strided_slice %2 {offsets = [2, 0], sizes = [1, 8], strides = [1, 1]} : vector<9x8xf32> to vector<1x8xf32>
    %62 = vector.shape_cast %61 : vector<1x8xf32> to vector<1x1x8xf32>
    %63 = vector.broadcast %62 : vector<1x1x8xf32> to vector<2x8x8xf32>
    %64 = arith.mulf %55, %63 : vector<2x8x8xf32>
    %65 = arith.addf %60, %64 : vector<2x8x8xf32>
    %66 = vector.extract_strided_slice %0 {offsets = [0, 3, 0], sizes = [2, 8, 8], strides = [1, 1, 1]} : vector<2x16x8xf32> to vector<2x8x8xf32>
    %67 = vector.extract_strided_slice %28 {offsets = [0, 3, 0], sizes = [2, 8, 8], strides = [1, 1, 1]} : vector<2x16x8xf32> to vector<2x8x8xf32>
    %68 = vector.extract_strided_slice %1 {offsets = [3, 0], sizes = [1, 8], strides = [1, 1]} : vector<9x8xf32> to vector<1x8xf32>
    %69 = vector.shape_cast %68 : vector<1x8xf32> to vector<1x1x8xf32>
    %70 = vector.broadcast %69 : vector<1x1x8xf32> to vector<2x8x8xf32>
    %71 = arith.mulf %66, %70 : vector<2x8x8xf32>
    %72 = arith.addf %65, %71 : vector<2x8x8xf32>
    %73 = vector.extract_strided_slice %2 {offsets = [3, 0], sizes = [1, 8], strides = [1, 1]} : vector<9x8xf32> to vector<1x8xf32>
    %74 = vector.shape_cast %73 : vector<1x8xf32> to vector<1x1x8xf32>
    %75 = vector.broadcast %74 : vector<1x1x8xf32> to vector<2x8x8xf32>
    %76 = arith.mulf %67, %75 : vector<2x8x8xf32>
    %77 = arith.addf %72, %76 : vector<2x8x8xf32>
    %78 = vector.extract_strided_slice %0 {offsets = [0, 4, 0], sizes = [2, 8, 8], strides = [1, 1, 1]} : vector<2x16x8xf32> to vector<2x8x8xf32>
    %79 = vector.extract_strided_slice %28 {offsets = [0, 4, 0], sizes = [2, 8, 8], strides = [1, 1, 1]} : vector<2x16x8xf32> to vector<2x8x8xf32>
    %80 = vector.extract_strided_slice %1 {offsets = [4, 0], sizes = [1, 8], strides = [1, 1]} : vector<9x8xf32> to vector<1x8xf32>
    %81 = vector.shape_cast %80 : vector<1x8xf32> to vector<1x1x8xf32>
    %82 = vector.broadcast %81 : vector<1x1x8xf32> to vector<2x8x8xf32>
    %83 = arith.mulf %78, %82 : vector<2x8x8xf32>
    %84 = arith.addf %77, %83 : vector<2x8x8xf32>
    %85 = vector.extract_strided_slice %2 {offsets = [4, 0], sizes = [1, 8], strides = [1, 1]} : vector<9x8xf32> to vector<1x8xf32>
    %86 = vector.shape_cast %85 : vector<1x8xf32> to vector<1x1x8xf32>
    %87 = vector.broadcast %86 : vector<1x1x8xf32> to vector<2x8x8xf32>
    %88 = arith.mulf %79, %87 : vector<2x8x8xf32>
    %89 = arith.addf %84, %88 : vector<2x8x8xf32>
    %90 = vector.extract_strided_slice %0 {offsets = [0, 5, 0], sizes = [2, 8, 8], strides = [1, 1, 1]} : vector<2x16x8xf32> to vector<2x8x8xf32>
    %91 = vector.extract_strided_slice %28 {offsets = [0, 5, 0], sizes = [2, 8, 8], strides = [1, 1, 1]} : vector<2x16x8xf32> to vector<2x8x8xf32>
    %92 = vector.extract_strided_slice %1 {offsets = [5, 0], sizes = [1, 8], strides = [1, 1]} : vector<9x8xf32> to vector<1x8xf32>
    %93 = vector.shape_cast %92 : vector<1x8xf32> to vector<1x1x8xf32>
    %94 = vector.broadcast %93 : vector<1x1x8xf32> to vector<2x8x8xf32>
    %95 = arith.mulf %90, %94 : vector<2x8x8xf32>
    %96 = arith.addf %89, %95 : vector<2x8x8xf32>
    %97 = vector.extract_strided_slice %2 {offsets = [5, 0], sizes = [1, 8], strides = [1, 1]} : vector<9x8xf32> to vector<1x8xf32>
    %98 = vector.shape_cast %97 : vector<1x8xf32> to vector<1x1x8xf32>
    %99 = vector.broadcast %98 : vector<1x1x8xf32> to vector<2x8x8xf32>
    %100 = arith.mulf %91, %99 : vector<2x8x8xf32>
    %101 = arith.addf %96, %100 : vector<2x8x8xf32>
    %102 = vector.extract_strided_slice %0 {offsets = [0, 6, 0], sizes = [2, 8, 8], strides = [1, 1, 1]} : vector<2x16x8xf32> to vector<2x8x8xf32>
    %103 = vector.extract_strided_slice %28 {offsets = [0, 6, 0], sizes = [2, 8, 8], strides = [1, 1, 1]} : vector<2x16x8xf32> to vector<2x8x8xf32>
    %104 = vector.extract_strided_slice %1 {offsets = [6, 0], sizes = [1, 8], strides = [1, 1]} : vector<9x8xf32> to vector<1x8xf32>
    %105 = vector.shape_cast %104 : vector<1x8xf32> to vector<1x1x8xf32>
    %106 = vector.broadcast %105 : vector<1x1x8xf32> to vector<2x8x8xf32>
    %107 = arith.mulf %102, %106 : vector<2x8x8xf32>
    %108 = arith.addf %101, %107 : vector<2x8x8xf32>
    %109 = vector.extract_strided_slice %2 {offsets = [6, 0], sizes = [1, 8], strides = [1, 1]} : vector<9x8xf32> to vector<1x8xf32>
    %110 = vector.shape_cast %109 : vector<1x8xf32> to vector<1x1x8xf32>
    %111 = vector.broadcast %110 : vector<1x1x8xf32> to vector<2x8x8xf32>
    %112 = arith.mulf %103, %111 : vector<2x8x8xf32>
    %113 = arith.addf %108, %112 : vector<2x8x8xf32>
    %114 = vector.extract_strided_slice %0 {offsets = [0, 7, 0], sizes = [2, 8, 8], strides = [1, 1, 1]} : vector<2x16x8xf32> to vector<2x8x8xf32>
    %115 = vector.extract_strided_slice %28 {offsets = [0, 7, 0], sizes = [2, 8, 8], strides = [1, 1, 1]} : vector<2x16x8xf32> to vector<2x8x8xf32>
    %116 = vector.extract_strided_slice %1 {offsets = [7, 0], sizes = [1, 8], strides = [1, 1]} : vector<9x8xf32> to vector<1x8xf32>
    %117 = vector.shape_cast %116 : vector<1x8xf32> to vector<1x1x8xf32>
    %118 = vector.broadcast %117 : vector<1x1x8xf32> to vector<2x8x8xf32>
    %119 = arith.mulf %114, %118 : vector<2x8x8xf32>
    %120 = arith.addf %113, %119 : vector<2x8x8xf32>
    %121 = vector.extract_strided_slice %2 {offsets = [7, 0], sizes = [1, 8], strides = [1, 1]} : vector<9x8xf32> to vector<1x8xf32>
    %122 = vector.shape_cast %121 : vector<1x8xf32> to vector<1x1x8xf32>
    %123 = vector.broadcast %122 : vector<1x1x8xf32> to vector<2x8x8xf32>
    %124 = arith.mulf %115, %123 : vector<2x8x8xf32>
    %125 = arith.addf %120, %124 : vector<2x8x8xf32>
    %126 = vector.extract_strided_slice %0 {offsets = [0, 8, 0], sizes = [2, 8, 8], strides = [1, 1, 1]} : vector<2x16x8xf32> to vector<2x8x8xf32>
    %127 = vector.extract_strided_slice %28 {offsets = [0, 8, 0], sizes = [2, 8, 8], strides = [1, 1, 1]} : vector<2x16x8xf32> to vector<2x8x8xf32>
    %128 = vector.extract_strided_slice %1 {offsets = [8, 0], sizes = [1, 8], strides = [1, 1]} : vector<9x8xf32> to vector<1x8xf32>
    %129 = vector.shape_cast %128 : vector<1x8xf32> to vector<1x1x8xf32>
    %130 = vector.broadcast %129 : vector<1x1x8xf32> to vector<2x8x8xf32>
    %131 = arith.mulf %126, %130 : vector<2x8x8xf32>
    %132 = arith.addf %125, %131 : vector<2x8x8xf32>
    %133 = vector.extract_strided_slice %2 {offsets = [8, 0], sizes = [1, 8], strides = [1, 1]} : vector<9x8xf32> to vector<1x8xf32>
    %134 = vector.shape_cast %133 : vector<1x8xf32> to vector<1x1x8xf32>
    %135 = vector.broadcast %134 : vector<1x1x8xf32> to vector<2x8x8xf32>
    %136 = arith.mulf %127, %135 : vector<2x8x8xf32>
    %137 = arith.addf %132, %136 : vector<2x8x8xf32>
    %c0_10 = arith.constant 0 : index
    %c0_11 = arith.constant 0 : index
    %c0_12 = arith.constant 0 : index
    %138 = vector.load %arg4[%c0_10, %c0_11, %c0_12] : memref<2x8x8xf32, #tpu.memory_space<vmem>>, vector<2x8x8xf32>
    tpu.vector_store %arg4[%c0_10, %c0_11, %c0_12], %137 {strides = array<i32>} : memref<2x8x8xf32, #tpu.memory_space<vmem>>, vector<2x8x8xf32>,
    return
  }
  func.func @transform_0(%arg0: i32) -> (i32, i32, i32) {
    %c0_i32 = arith.constant 0 : i32
    %c0_i32_0 = arith.constant 0 : i32
    %c0_i32_1 = arith.constant 0 : i32
    return %arg0, %c0_i32, %c0_i32_0 : i32, i32, i32
  }
  func.func @transform_1(%arg0: i32) -> (i32, i32) {
    %c0_i32 = arith.constant 0 : i32
    %c0_i32_0 = arith.constant 0 : i32
    %c0_i32_1 = arith.constant 0 : i32
    return %c0_i32, %c0_i32_0 : i32, i32
  }
  func.func @transform_2(%arg0: i32) -> (i32, i32) {
    %c0_i32 = arith.constant 0 : i32
    %c0_i32_0 = arith.constant 0 : i32
    %c0_i32_1 = arith.constant 0 : i32
    return %c0_i32, %c0_i32_0 : i32, i32
  }
  func.func @transform_3(%arg0: i32) -> (i32, i32, i32) {
    %c0_i32 = arith.constant 0 : i32
    %c0_i32_0 = arith.constant 0 : i32
    %c0_i32_1 = arith.constant 0 : i32
    return %arg0, %c0_i32, %c0_i32_0 : i32, i32, i32
  }
}

</mosaic_0001>

<llo_original>
// kernel: txa_filter_complex.1
$region0: #{txa_filter_complex.1}
  #allocation0 [shape = 'u32[]', space=smem, size = 0x4, offset = 0x4, fixed_abs, tag = 'smem constant byte address 0x4 - core index']
  #allocation1 [shape = 'u32[144,128]{1,0:T(1,128)}', space=vmem, size = 0x12000, scoped, tag = 'internal scratch']
  %s0 = inlined_call_operand.vmem [shape: f32[2,16,8], index: 0, kind: input, shape index: {}]
  %s1 = inlined_call_operand.vmem [shape: f32[9,8], index: 1, kind: input, shape index: {}]
  %s2 = inlined_call_operand.vmem [shape: f32[9,8], index: 2, kind: input, shape index: {}]
  %s3 = inlined_call_operand.vmem [shape: f32[2,8,8], index: 3, kind: output, shape index: {}]
  %s4 = sld [smem:[#allocation0]]
  $region22: #{txa_filter_complex.1} parent=0
    _
  %s6 = ssub.s32 1, %s4
  %s7 = scalar_select 0, %s6, %s4
  // Predicated region
  $region2: #{txa_filter_complex.1} parent=0 // pred_check
    _
  $region3: #{txa_filter_complex.1} parent=0 // pred_check_branch
    %9 = sbr.rel (0) target = $region5
  $region4: #{txa_filter_complex.1} parent=0 // pred_region
    _
  $region5: #{txa_filter_complex.1} parent=0 // pred_fallthru
    _
  // Predicated region
  $region6: #{txa_filter_complex.1} parent=0 // pred_check
    _
  $region7: #{txa_filter_complex.1} parent=0 // pred_check_branch
    %11 = sbr.rel (0) target = $region9
  $region8: #{txa_filter_complex.1} parent=0 // pred_region
    _
  $region9: #{txa_filter_complex.1} parent=0 // pred_fallthru
    _
  // Predicated region
  $region10: #{txa_filter_complex.1} parent=0 // pred_check
    _
  $region11: #{txa_filter_complex.1} parent=0 // pred_check_branch
    %13 = sbr.rel (0) target = $region13
  $region12: #{txa_filter_complex.1} parent=0 // pred_region
    _
  $region13: #{txa_filter_complex.1} parent=0 // pred_fallthru
    _
  %v14 = vld [vmem:[%s0] sm:$0xff]
  %v15 = vld [vmem:[%s0 + $0x8] sm:$0xff]
  %v16 = vld [vmem:[%s0 + $0x10] sm:$0xff]
  %v17 = vld [vmem:[%s0 + $0x18] sm:$0xff]
  %v18 = vld [vmem:[%s1] sm:$0xff]
  %v19 = vld [vmem:[%s1 + $0x8] sm:$0x1]
  %v20 = vld [vmem:[%s2] sm:$0xff]
  %v21 = vld [vmem:[%s2 + $0x8] sm:$0x1]
  %26 = vrot.lane.b32.xlu0 %v14, 127
  %v27 = vpop.permute.xlu0 %26
  %28 = vrot.lane.b32.xlu0 %v15, 127
  %v29 = vpop.permute.xlu0 %28
  %30 = vrot.lane.b32.xlu0 %v16, 127
  %v31 = vpop.permute.xlu0 %30
  %32 = vrot.lane.b32.xlu0 %v17, 127
  %v33 = vpop.permute.xlu0 %32
  %38 = vrot.lane.b32.xlu0 %v14, 7
  %v39 = vpop.permute.xlu0 %38
  %40 = vrot.lane.b32.xlu0 %v15, 7
  %v41 = vpop.permute.xlu0 %40
  %42 = vrot.lane.b32.xlu0 %v16, 7
  %v43 = vpop.permute.xlu0 %42
  %44 = vrot.lane.b32.xlu0 %v17, 7
  %v45 = vpop.permute.xlu0 %44
  %vm50 = vcmask 56320
  %v51 = vsel %vm50, %v27, %v39
  %v52 = vsel %vm50, %v29, %v41
  %v53 = vsel %vm50, %v31, %v43
  %v54 = vsel %vm50, %v33, %v45
  %55 = vrot.lane.b32.xlu0 %v14, 121
  %v56 = vpop.permute.xlu0 %55
  %57 = vrot.lane.b32.xlu0 %v15, 121
  %v58 = vpop.permute.xlu0 %57
  %59 = vrot.lane.b32.xlu0 %v16, 121
  %v60 = vpop.permute.xlu0 %59
  %61 = vrot.lane.b32.xlu0 %v17, 121
  %v62 = vpop.permute.xlu0 %61
  %67 = vrot.lane.b32.xlu0 %v14, 1
  %v68 = vpop.permute.xlu0 %67
  %69 = vrot.lane.b32.xlu0 %v15, 1
  %v70 = vpop.permute.xlu0 %69
  %71 = vrot.lane.b32.xlu0 %v16, 1
  %v72 = vpop.permute.xlu0 %71
  %73 = vrot.lane.b32.xlu0 %v17, 1
  %v74 = vpop.permute.xlu0 %73
  %vm79 = vcmask 7168
  %v80 = vsel %vm79, %v56, %v68
  %v81 = vsel %vm79, %v58, %v70
  %v82 = vsel %vm79, %v60, %v72
  %v83 = vsel %vm79, %v62, %v74
  %v84 = vlaneseq
  %v85 = vand.u32 %v84, 127
  %vm86 = vcmp.lt.s32.totalorder %v85, 0
  %v87 = vsub.s32 0, %v85
  %v88 = vsel %vm86, %v87, %v85
  %v89 = vshrl.u32 %v88, 1
  %v90 = vand.u32 %v88, 1
  %v91 = vsub.s32 0, %v90
  %v92 = vsel %vm86, %v91, %v90
  %vm93 = vcmp.ne.s32.totalorder %v92, 0
  %vm94 = vcmp.lt.s32.totalorder %v92, 0
  %vm95 = vmand %vm94, %vm93
  %v96 = vadd.s32 %v92, 2
  %v97 = vsel %vm95, %v96, %v92
  %vm98 = vcmp.eq.s32.totalorder %v97, 0
  %v99 = vsel %vm98, %v51, %v80
  %v100 = vsel %vm98, %v52, %v81
  %v101 = vsel %vm98, %v53, %v82
  %v102 = vsel %vm98, %v54, %v83
  %v103 = vlaneseq
  %v104 = vshrl.u32 %v103, 7
  %v105 = vsub.s32 0, %v104
  %v106 = vrot.slane %v18, %v105
  %v107 = vmul.f32 %v14, %v106
  %v108 = vmul.f32 %v16, %v106
  %v109 = vadd.f32 %v107, 0.0
  %v110 = vadd.f32 %v108, 0.0
  %v111 = vlaneseq
  %v112 = vshrl.u32 %v111, 7
  %v113 = vsub.s32 0, %v112
  %v114 = vrot.slane %v20, %v113
  %v115 = vmul.f32 %v99, %v114
  %v116 = vmul.f32 %v101, %v114
  %v117 = vadd.f32 %v109, %v115
  %v118 = vadd.f32 %v110, %v116
  %v119 = vlaneseq
  %v120 = vshrl.u32 %v119, 7
  %v121 = vsub.s32 1, %v120
  %v122 = vrot.slane %v18, %v121
  %v123 = vmul.f32 %v14, %v122
  %v124 = vmul.f32 %v15, %v122
  %v125 = vmul.f32 %v16, %v122
  %v126 = vmul.f32 %v17, %v122
  %vm131 = vcmask 1046528
  %v132 = vrot.slane %v123, 1
  %v133 = vrot.slane %v124, 1
  %v134 = vsel %vm131, %v132, %v133
  %v135 = vrot.slane %v125, 1
  %v136 = vrot.slane %v126, 1
  %v137 = vsel %vm131, %v135, %v136
  %v140 = vadd.f32 %v117, %v134
  %v141 = vadd.f32 %v118, %v137
  %v142 = vlaneseq
  %v143 = vshrl.u32 %v142, 7
  %v144 = vsub.s32 1, %v143
  %v145 = vrot.slane %v20, %v144
  %v146 = vmul.f32 %v99, %v145
  %v147 = vmul.f32 %v100, %v145
  %v148 = vmul.f32 %v101, %v145
  %v149 = vmul.f32 %v102, %v145
  %v154 = vrot.slane %v146, 1
  %v155 = vrot.slane %v147, 1
  %v156 = vsel %vm131, %v154, %v155
  %v157 = vrot.slane %v148, 1
  %v158 = vrot.slane %v149, 1
  %v159 = vsel %vm131, %v157, %v158
  %v162 = vadd.f32 %v140, %v156
  %v163 = vadd.f32 %v141, %v159
  %v164 = vlaneseq
  %v165 = vshrl.u32 %v164, 7
  %v166 = vsub.s32 2, %v165
  %v167 = vrot.slane %v18, %v166
  %v168 = vmul.f32 %v14, %v167
  %v169 = vmul.f32 %v15, %v167
  %v170 = vmul.f32 %v16, %v167
  %v171 = vmul.f32 %v17, %v167
  %vm176 = vcmask 1045504
  %v177 = vrot.slane %v168, 2
  %v178 = vrot.slane %v169, 2
  %v179 = vsel %vm176, %v177, %v178
  %v180 = vrot.slane %v170, 2
  %v181 = vrot.slane %v171, 2
  %v182 = vsel %vm176, %v180, %v181
  %v185 = vadd.f32 %v162, %v179
  %v186 = vadd.f32 %v163, %v182
  %v187 = vlaneseq
  %v188 = vshrl.u32 %v187, 7
  %v189 = vsub.s32 2, %v188
  %v190 = vrot.slane %v20, %v189
  %v191 = vmul.f32 %v99, %v190
  %v192 = vmul.f32 %v100, %v190
  %v193 = vmul.f32 %v101, %v190
  %v194 = vmul.f32 %v102, %v190
  %v199 = vrot.slane %v191, 2
  %v200 = vrot.slane %v192, 2
  %v201 = vsel %vm176, %v199, %v200
  %v202 = vrot.slane %v193, 2
  %v203 = vrot.slane %v194, 2
  %v204 = vsel %vm176, %v202, %v203
  %v207 = vadd.f32 %v185, %v201
  %v208 = vadd.f32 %v186, %v204
  %v209 = vlaneseq
  %v210 = vshrl.u32 %v209, 7
  %v211 = vsub.s32 3, %v210
  %v212 = vrot.slane %v18, %v211
  %v213 = vmul.f32 %v14, %v212
  %v214 = vmul.f32 %v15, %v212
  %v215 = vmul.f32 %v16, %v212
  %v216 = vmul.f32 %v17, %v212
  %vm221 = vcmask 1044480
  %v222 = vrot.slane %v213, 3
  %v223 = vrot.slane %v214, 3
  %v224 = vsel %vm221, %v222, %v223
  %v225 = vrot.slane %v215, 3
  %v226 = vrot.slane %v216, 3
  %v227 = vsel %vm221, %v225, %v226
  %v230 = vadd.f32 %v207, %v224
  %v231 = vadd.f32 %v208, %v227
  %v232 = vlaneseq
  %v233 = vshrl.u32 %v232, 7
  %v234 = vsub.s32 3, %v233
  %v235 = vrot.slane %v20, %v234
  %v236 = vmul.f32 %v99, %v235
  %v237 = vmul.f32 %v100, %v235
  %v238 = vmul.f32 %v101, %v235
  %v239 = vmul.f32 %v102, %v235
  %v244 = vrot.slane %v236, 3
  %v245 = vrot.slane %v237, 3
  %v246 = vsel %vm221, %v244, %v245
  %v247 = vrot.slane %v238, 3
  %v248 = vrot.slane %v239, 3
  %v249 = vsel %vm221, %v247, %v248
  %v252 = vadd.f32 %v230, %v246
  %v253 = vadd.f32 %v231, %v249
  %v254 = vlaneseq
  %v255 = vshrl.u32 %v254, 7
  %v256 = vsub.s32 4, %v255
  %v257 = vrot.slane %v18, %v256
  %v258 = vmul.f32 %v14, %v257
  %v259 = vmul.f32 %v15, %v257
  %v260 = vmul.f32 %v16, %v257
  %v261 = vmul.f32 %v17, %v257
  %vm266 = vcmask 1043456
  %v267 = vrot.slane %v258, 4
  %v268 = vrot.slane %v259, 4
  %v269 = vsel %vm266, %v267, %v268
  %v270 = vrot.slane %v260, 4
  %v271 = vrot.slane %v261, 4
  %v272 = vsel %vm266, %v270, %v271
  %v275 = vadd.f32 %v252, %v269
  %v276 = vadd.f32 %v253, %v272
  %v277 = vlaneseq
  %v278 = vshrl.u32 %v277, 7
  %v279 = vsub.s32 4, %v278
  %v280 = vrot.slane %v20, %v279
  %v281 = vmul.f32 %v99, %v280
  %v282 = vmul.f32 %v100, %v280
  %v283 = vmul.f32 %v101, %v280
  %v284 = vmul.f32 %v102, %v280
  %v289 = vrot.slane %v281, 4
  %v290 = vrot.slane %v282, 4
  %v291 = vsel %vm266, %v289, %v290
  %v292 = vrot.slane %v283, 4
  %v293 = vrot.slane %v284, 4
  %v294 = vsel %vm266, %v292, %v293
  %v297 = vadd.f32 %v275, %v291
  %v298 = vadd.f32 %v276, %v294
  %v299 = vlaneseq
  %v300 = vshrl.u32 %v299, 7
  %v301 = vsub.s32 5, %v300
  %v302 = vrot.slane %v18, %v301
  %v303 = vmul.f32 %v14, %v302
  %v304 = vmul.f32 %v15, %v302
  %v305 = vmul.f32 %v16, %v302
  %v306 = vmul.f32 %v17, %v302
  %vm311 = vcmask 1042432
  %v312 = vrot.slane %v303, 5
  %v313 = vrot.slane %v304, 5
  %v314 = vsel %vm311, %v312, %v313
  %v315 = vrot.slane %v305, 5
  %v316 = vrot.slane %v306, 5
  %v317 = vsel %vm311, %v315, %v316
  %v320 = vadd.f32 %v297, %v314
  %v321 = vadd.f32 %v298, %v317
  %v322 = vlaneseq
  %v323 = vshrl.u32 %v322, 7
  %v324 = vsub.s32 5, %v323
  %v325 = vrot.slane %v20, %v324
  %v326 = vmul.f32 %v99, %v325
  %v327 = vmul.f32 %v100, %v325
  %v328 = vmul.f32 %v101, %v325
  %v329 = vmul.f32 %v102, %v325
  %v334 = vrot.slane %v326, 5
  %v335 = vrot.slane %v327, 5
  %v336 = vsel %vm311, %v334, %v335
  %v337 = vrot.slane %v328, 5
  %v338 = vrot.slane %v329, 5
  %v339 = vsel %vm311, %v337, %v338
  %v342 = vadd.f32 %v320, %v336
  %v343 = vadd.f32 %v321, %v339
  %v344 = vlaneseq
  %v345 = vshrl.u32 %v344, 7
  %v346 = vsub.s32 6, %v345
  %v347 = vrot.slane %v18, %v346
  %v348 = vmul.f32 %v14, %v347
  %v349 = vmul.f32 %v15, %v347
  %v350 = vmul.f32 %v16, %v347
  %v351 = vmul.f32 %v17, %v347
  %vm356 = vcmask 1041408
  %v357 = vrot.slane %v348, 6
  %v358 = vrot.slane %v349, 6
  %v359 = vsel %vm356, %v357, %v358
  %v360 = vrot.slane %v350, 6
  %v361 = vrot.slane %v351, 6
  %v362 = vsel %vm356, %v360, %v361
  %v365 = vadd.f32 %v342, %v359
  %v366 = vadd.f32 %v343, %v362
  %v367 = vlaneseq
  %v368 = vshrl.u32 %v367, 7
  %v369 = vsub.s32 6, %v368
  %v370 = vrot.slane %v20, %v369
  %v371 = vmul.f32 %v99, %v370
  %v372 = vmul.f32 %v100, %v370
  %v373 = vmul.f32 %v101, %v370
  %v374 = vmul.f32 %v102, %v370
  %v379 = vrot.slane %v371, 6
  %v380 = vrot.slane %v372, 6
  %v381 = vsel %vm356, %v379, %v380
  %v382 = vrot.slane %v373, 6
  %v383 = vrot.slane %v374, 6
  %v384 = vsel %vm356, %v382, %v383
  %v387 = vadd.f32 %v365, %v381
  %v388 = vadd.f32 %v366, %v384
  %v389 = vlaneseq
  %v390 = vshrl.u32 %v389, 7
  %v391 = vsub.s32 7, %v390
  %v392 = vrot.slane %v18, %v391
  %v393 = vmul.f32 %v14, %v392
  %v394 = vmul.f32 %v15, %v392
  %v395 = vmul.f32 %v16, %v392
  %v396 = vmul.f32 %v17, %v392
  %vm401 = vcmask 1040384
  %v402 = vrot.slane %v393, 7
  %v403 = vrot.slane %v394, 7
  %v404 = vsel %vm401, %v402, %v403
  %v405 = vrot.slane %v395, 7
  %v406 = vrot.slane %v396, 7
  %v407 = vsel %vm401, %v405, %v406
  %v410 = vadd.f32 %v387, %v404
  %v411 = vadd.f32 %v388, %v407
  %v412 = vlaneseq
  %v413 = vshrl.u32 %v412, 7
  %v414 = vsub.s32 7, %v413
  %v415 = vrot.slane %v20, %v414
  %v416 = vmul.f32 %v99, %v415
  %v417 = vmul.f32 %v100, %v415
  %v418 = vmul.f32 %v101, %v415
  %v419 = vmul.f32 %v102, %v415
  %v424 = vrot.slane %v416, 7
  %v425 = vrot.slane %v417, 7
  %v426 = vsel %vm401, %v424, %v425
  %v427 = vrot.slane %v418, 7
  %v428 = vrot.slane %v419, 7
  %v429 = vsel %vm401, %v427, %v428
  %v432 = vadd.f32 %v410, %v426
  %v433 = vadd.f32 %v411, %v429
  %v434 = vlaneseq
  %v435 = vshrl.u32 %v434, 7
  %v436 = vsub.s32 0, %v435
  %v437 = vrot.slane %v19, %v436
  %v438 = vmul.f32 %v15, %v437
  %v439 = vmul.f32 %v17, %v437
  %v440 = vadd.f32 %v432, %v438
  %v441 = vadd.f32 %v433, %v439
  %v442 = vlaneseq
  %v443 = vshrl.u32 %v442, 7
  %v444 = vsub.s32 0, %v443
  %v445 = vrot.slane %v21, %v444
  %v446 = vmul.f32 %v100, %v445
  %v447 = vmul.f32 %v102, %v445
  %v448 = vadd.f32 %v440, %v446
  %v449 = vadd.f32 %v441, %v447
  %vm450 = vcmask 64512
  %451 = vst.msk [vmem:[%s3] sm:$0xff] %vm450, %v448
  %452 = vst.msk [vmem:[%s3 + $0x8] sm:$0xff] %vm450, %v449
  // Predicated region
  $region14: #{txa_filter_complex.1} parent=0 // pred_check
    _
  $region15: #{txa_filter_complex.1} parent=0 // pred_check_branch
    %454 = sbr.rel (0) target = $region17
  $region16: #{txa_filter_complex.1} parent=0 // pred_region
    _
  $region17: #{txa_filter_complex.1} parent=0 // pred_fallthru
    _
  // Predicated region
  $region18: #{txa_filter_complex.1} parent=0 // pred_check
    _
  $region19: #{txa_filter_complex.1} parent=0 // pred_check_branch
    %456 = sbr.rel (0) target = $region21
  $region20: #{txa_filter_complex.1} parent=0 // pred_region
    _
  $region21: #{txa_filter_complex.1} parent=0 // pred_fallthru
    _

</llo_original>
